<compile_context>
chip_gen: v5e
topology: v5e:2x2
jax: 0.10.0
libtpu: 0.0.40
codegen_flags: <defaults>
</compile_context>

<pallas_src>
import functools

import jax
import jax.numpy as jnp
from jax import lax
from jax.experimental import pallas as pl
from jax.experimental.pallas import tpu as pltpu


def _round_up(v, m):
    return (v + m - 1) // m * m


def _ls_ce_kernel(x_ref, tgt_ref, out_ref, m_acc, l_acc, ws_acc, *,
                  smoothing, n_rows, n_cols, tile_n, tile_c, col_mask):
    """One (row-tile, C-chunk) step of fused label-smoothing CE."""
    confidence = 1.0 - smoothing
    uniform_w = smoothing / n_cols
    i = pl.program_id(0)            # row tile   (first, "parallel")
    k = pl.program_id(1)            # C chunk    (last,  "arbitrary")

    @pl.when(k == 0)
    def _init():
        m_acc[...] = jnp.full_like(m_acc, -jnp.inf)
        l_acc[...] = jnp.zeros_like(l_acc)
        ws_acc[...] = jnp.zeros_like(ws_acc)

    x_nat = x_ref[...]                                        # (TILE_N, TILE_C)
    tgt = tgt_ref[...]                                        # (TILE_N, 1) int32
    col_iota = lax.broadcasted_iota(jnp.int32, (tile_n, tile_c), 1)

    x = x_nat.astype(jnp.float32)                             # f32 math

    if col_mask:
        # Ragged last C chunk: out-of-range lanes hold unspecified data.
        valid = col_iota < (n_cols - k * tile_c)
        x_exp_in = jnp.where(valid, x, -jnp.inf)              # exp() -> 0
        x_sum_in = jnp.where(valid, x, 0.0)                   # no contribution
        m_chunk = jnp.max(x_exp_in, axis=-1, keepdims=True)
    else:
        x_exp_in = x
        x_sum_in = x
        # Max on the native dtype is exact and cheaper (bf16: 2x elems/vreg).
        m_chunk = jnp.max(x_nat, axis=-1, keepdims=True).astype(jnp.float32)

    # Online log-sum-exp update.
    m_old = m_acc[...]
    m_new = jnp.maximum(m_old, m_chunk)
    p_sum = jnp.sum(jnp.exp(x_exp_in - m_new), axis=-1, keepdims=True)
    l_acc[...] = l_acc[...] * jnp.exp(m_old - m_new) + p_sum
    m_acc[...] = m_new

    # Weighted-logit accumulator (independent of the running max -> no rescale):
    #   sum_c x_c * w_c = (smoothing/C) * sum_c x_c + confidence * x_target
    adj_tgt = tgt - k * tile_c                                # per-row chunk-local target
    tgt_logit = jnp.sum(jnp.where(col_iota == adj_tgt, x, 0.0),
                        axis=-1, keepdims=True)
    row_sum = jnp.sum(x_sum_in, axis=-1, keepdims=True)
    ws_acc[...] += uniform_w * row_sum + confidence * tgt_logit

    @pl.when(k == pl.num_programs(1) - 1)
    def _finalize():
        loss = m_acc[...] + jnp.log(l_acc[...]) - ws_acc[...]     # (TILE_N, 1)
        loss_row = jnp.transpose(loss, (1, 0))                    # (1, TILE_N) lane-dense
        row_ids = i * tile_n + lax.broadcasted_iota(jnp.int32, (1, tile_n), 1)
        out_ref[...] = jnp.where(row_ids < n_rows, loss_row, 0.0)


def _vmem_capacity_bytes():
    try:
        return int(pltpu.get_tpu_info().vmem_capacity_bytes)
    except Exception:
        return 64 << 20   # conservative fallback == v7x per-TensorCore VMEM


def _block_cost_bytes(tile_n, tile_c, itemsize):
    # Double-buffered logits block + ~4 tile-sized f32/int32 temporaries
    # (f32 cast, exp operand, iota, select) + targets/accumulators/output slack.
    return 2 * tile_n * tile_c * itemsize + 4 * tile_n * tile_c * 4 + (512 << 10)


def _choose_tiles(n_rows, n_cols, itemsize, budget):
    target = 4 << 20                       # ~4 MiB logits block (2-8 MiB sweet spot)
    n_cap = max(128, min(_round_up(n_rows, 128), 2048))

    # Case A: whole class axis in one chunk (no online-LSE rescale, no col mask).
    tn = (target // max(1, n_cols * itemsize)) // 128 * 128
    tn = max(128, min(tn, n_cap))
    while tn > 128 and _block_cost_bytes(tn, n_cols, itemsize) > budget:
        tn -= 128
    if _block_cost_bytes(tn, n_cols, itemsize) <= budget:
        return tn, n_cols

    # Case B: vocab-scale C -- split the class axis into lane-aligned chunks and
    # reduce with online logsumexp over the trailing "arbitrary" grid axis.
    tn = min(n_cap, 256)
    c_pad = _round_up(n_cols, 128)
    tc = (target // max(1, tn * itemsize)) // 128 * 128
    tc = max(128, min(tc, c_pad))
    while tc > 128 and _block_cost_bytes(tn, tc, itemsize) > budget:
        tc = max(128, (tc // 2) // 128 * 128)
    while tn > 128 and _block_cost_bytes(tn, tc, itemsize) > budget:
        tn -= 128
    return tn, tc


def label_smoothing_cross_entropy(x, target, smoothing=0.1,
                                  tile_n=None, tile_c=None):
    """Pallas implementation of LabelSmoothingCrossEntropy.forward.

    x:      (N, C) float logits (f32 or bf16)
    target: (N,)   integer class indices (assumed in [0, C))
    returns scalar f32 mean loss
    """
    N, C = x.shape
    itemsize = jnp.dtype(x.dtype).itemsize

    vmem_cap = _vmem_capacity_bytes()
    budget = max(vmem_cap - (12 << 20), 8 << 20)

    auto_tn, auto_tc = _choose_tiles(N, C, itemsize, budget)
    if tile_n is None:
        tile_n = auto_tn
    else:
        tile_n = max(128, _round_up(int(tile_n), 128))
    tile_n = max(128, min(tile_n, _round_up(N, 128)))
    if tile_c is None:
        tile_c = auto_tc
    else:
        tc = _round_up(max(1, int(tile_c)), 128)
        tile_c = C if tc >= C else tc

    num_n_tiles = pl.cdiv(N, tile_n)
    num_c_tiles = pl.cdiv(C, tile_c)
    n_pad = num_n_tiles * tile_n
    col_mask = (num_c_tiles * tile_c) != C

    cost = _block_cost_bytes(tile_n, tile_c, itemsize)
    vmem_limit = int(max(16 << 20,
                         min(vmem_cap - (2 << 20),
                             max(32 << 20, cost + (8 << 20)))))

    tgt2d = target.astype(jnp.int32).reshape(N, 1)

    kernel = functools.partial(
        _ls_ce_kernel, smoothing=float(smoothing), n_rows=N, n_cols=C,
        tile_n=tile_n, tile_c=tile_c, col_mask=col_mask)

    per_row = pl.pallas_call(
        kernel,
        out_shape=jax.ShapeDtypeStruct((1, n_pad), jnp.float32),
        grid=(num_n_tiles, num_c_tiles),
        in_specs=[
            pl.BlockSpec((tile_n, tile_c), lambda i, k: (i, k)),   # logits block
            pl.BlockSpec((tile_n, 1), lambda i, k: (i, 0)),        # targets block
        ],
        out_specs=pl.BlockSpec((1, tile_n), lambda i, k: (0, i)),  # lane-dense row
        scratch_shapes=[
            pltpu.VMEM((tile_n, 1), jnp.float32),   # running max m
            pltpu.VMEM((tile_n, 1), jnp.float32),   # running sum-exp l
            pltpu.VMEM((tile_n, 1), jnp.float32),   # running weighted-logit sum
        ],
        compiler_params=pltpu.CompilerParams(
            dimension_semantics=("parallel", "arbitrary"),
            vmem_limit_bytes=vmem_limit,
        ),
    )(x, tgt2d)

    # Padded rows contribute exactly 0; divide by the true batch size.
    return jnp.sum(per_row) / N


def _reference(x, target, smoothing=0.1):
    confidence = 1.0 - smoothing
    logprobs = jax.nn.log_softmax(x.astype(jnp.float32), axis=-1)
    nll = -jnp.take_along_axis(logprobs, target[:, None].astype(jnp.int32),
                               axis=-1)[:, 0]
    smooth = -jnp.mean(logprobs, axis=-1)
    return jnp.mean(confidence * nll + smoothing * smooth)


if __name__ == "__main__":
    key = jax.random.PRNGKey(0)
    k1, k2, k3, k4, k5, k6 = jax.random.split(key, 6)

    # Test 1: small f32 case, fully automatic tiling (single tile, full C).
    N1, C1 = 8, 32
    x1 = jax.random.normal(k1, (N1, C1), dtype=jnp.float32)
    t1 = jax.random.randint(k2, (N1,), 0, C1, dtype=jnp.int32)
    out1 = jax.block_until_ready(label_smoothing_cross_entropy(x1, t1, 0.1))
    ref1 = _reference(x1, t1, 0.1)
    assert jnp.allclose(out1, ref1, atol=1e-4, rtol=1e-4), (out1, ref1)

    # Test 2: bf16 logits, several row tiles with a masked remainder tile.
    N2, C2 = 300, 160
    x2 = jax.random.normal(k3, (N2, C2), dtype=jnp.float32).astype(jnp.bfloat16)
    t2 = jax.random.randint(k4, (N2,), 0, C2, dtype=jnp.int32)
    out2 = jax.block_until_ready(
        label_smoothing_cross_entropy(x2, t2, 0.1, tile_n=128))
    ref2 = _reference(x2, t2, 0.1)
    assert jnp.allclose(out2, ref2, atol=1e-4, rtol=1e-4), (out2, ref2)

    # Test 3: class axis split over the trailing "arbitrary" grid axis
    # (online logsumexp) with a ragged last chunk (column-mask path).
    N3, C3 = 40, 200
    x3 = jax.random.normal(k5, (N3, C3), dtype=jnp.float32)
    t3 = jax.random.randint(k6, (N3,), 0, C3, dtype=jnp.int32)
    out3 = jax.block_until_ready(
        label_smoothing_cross_entropy(x3, t3, 0.1, tile_c=128))
    ref3 = _reference(x3, t3, 0.1)
    assert jnp.allclose(out3, ref3, atol=1e-4, rtol=1e-4), (out3, ref3)

    print("KERNEL_OK")
</pallas_src>

<mosaic_0001>
module attributes {stable_mosaic.version = 11 : i64} {
  func.func @_ls_ce_kernel(%arg0: i32, %arg1: i32, %arg2: memref<128x32xf32, #tpu.memory_space<vmem>>, %arg3: memref<128x1xi32, #tpu.memory_space<vmem>>, %arg4: memref<1x128xf32, #tpu.memory_space<vmem>>, %arg5: memref<128x1xf32, #tpu.memory_space<vmem>>, %arg6: memref<128x1xf32, #tpu.memory_space<vmem>>, %arg7: memref<128x1xf32, #tpu.memory_space<vmem>>) attributes {dimension_semantics = [#tpu.dimension_semantics<parallel>, #tpu.dimension_semantics<arbitrary>], iteration_bounds = array<i64: 1, 1>, scalar_prefetch = 0 : i64, scratch_operands = 3 : i64, tpu.core_type = #tpu.core_type<tc>, window_params = [{transform_indices = @transform_0, window_bounds = array<i64: 128, 32>}, {transform_indices = @transform_1, window_bounds = array<i64: 128, 1>}, {transform_indices = @transform_2, window_bounds = array<i64: 1, 128>}]} {
    %c0_i32 = arith.constant 0 : i32
    %0 = arith.cmpi eq, %arg1, %c0_i32 : i32
    %1 = arith.extui %0 : i1 to i32
    %c0_i32_0 = arith.constant 0 : i32
    %2 = arith.cmpi ne, %1, %c0_i32_0 : i32
    scf.if %2 {
      %cst_24 = arith.constant 0xFF800000 : f32
      %44 = vector.broadcast %cst_24 : f32 to vector<128x1xf32>
      %c0_25 = arith.constant 0 : index
      %c0_26 = arith.constant 0 : index
      %45 = vector.load %arg5[%c0_25, %c0_26] : memref<128x1xf32, #tpu.memory_space<vmem>>, vector<128x1xf32>
      tpu.vector_store %arg5[%c0_25, %c0_26], %44 {strides = array<i32>} : memref<128x1xf32, #tpu.memory_space<vmem>>, vector<128x1xf32>,
      %cst_27 = arith.constant 0.000000e+00 : f32
      %46 = vector.broadcast %cst_27 : f32 to vector<128x1xf32>
      %c0_28 = arith.constant 0 : index
      %c0_29 = arith.constant 0 : index
      %47 = vector.load %arg6[%c0_28, %c0_29] : memref<128x1xf32, #tpu.memory_space<vmem>>, vector<128x1xf32>
      tpu.vector_store %arg6[%c0_28, %c0_29], %46 {strides = array<i32>} : memref<128x1xf32, #tpu.memory_space<vmem>>, vector<128x1xf32>,
      %cst_30 = arith.constant 0.000000e+00 : f32
      %48 = vector.broadcast %cst_30 : f32 to vector<128x1xf32>
      %c0_31 = arith.constant 0 : index
      %c0_32 = arith.constant 0 : index
      %49 = vector.load %arg7[%c0_31, %c0_32] : memref<128x1xf32, #tpu.memory_space<vmem>>, vector<128x1xf32>
      tpu.vector_store %arg7[%c0_31, %c0_32], %48 {strides = array<i32>} : memref<128x1xf32, #tpu.memory_space<vmem>>, vector<128x1xf32>,
    } else {
    }
    %c0 = arith.constant 0 : index
    %c0_1 = arith.constant 0 : index
    %3 = vector.load %arg2[%c0, %c0_1] : memref<128x32xf32, #tpu.memory_space<vmem>>, vector<128x32xf32>
    %c0_2 = arith.constant 0 : index
    %c0_3 = arith.constant 0 : index
    %4 = vector.load %arg3[%c0_2, %c0_3] : memref<128x1xi32, #tpu.memory_space<vmem>>, vector<128x1xi32>
    %5 = tpu.iota {dimensions = array<i32: 1>} : vector<128x32xi32>
    %cst = arith.constant dense<0xFF800000> : vector<128xf32>
    %6 = vector.multi_reduction <maximumf>, %3, %cst [1] : vector<128x32xf32> to vector<128xf32>
    %7 = vector.shape_cast %6 : vector<128xf32> to vector<128x1xf32>
    %c0_4 = arith.constant 0 : index
    %c0_5 = arith.constant 0 : index
    %8 = vector.load %arg5[%c0_4, %c0_5] : memref<128x1xf32, #tpu.memory_space<vmem>>, vector<128x1xf32>
    %9 = arith.maximumf %8, %7 : vector<128x1xf32>
    %10 = vector.broadcast %9 : vector<128x1xf32> to vector<128x32xf32>
    %11 = arith.subf %3, %10 : vector<128x32xf32>
    %12 = math.exp %11 : vector<128x32xf32>
    %cst_6 = arith.constant dense<0.000000e+00> : vector<128xf32>
    %13 = vector.multi_reduction <add>, %12, %cst_6 [1] : vector<128x32xf32> to vector<128xf32>
    %14 = vector.shape_cast %13 : vector<128xf32> to vector<128x1xf32>
    %c0_7 = arith.constant 0 : index
    %c0_8 = arith.constant 0 : index
    %15 = vector.load %arg6[%c0_7, %c0_8] : memref<128x1xf32, #tpu.memory_space<vmem>>, vector<128x1xf32>
    %16 = arith.subf %8, %9 : vector<128x1xf32>
    %17 = math.exp %16 : vector<128x1xf32>
    %18 = arith.mulf %15, %17 : vector<128x1xf32>
    %19 = arith.addf %18, %14 : vector<128x1xf32>
    %c0_9 = arith.constant 0 : index
    %c0_10 = arith.constant 0 : index
    %20 = vector.load %arg6[%c0_9, %c0_10] : memref<128x1xf32, #tpu.memory_space<vmem>>, vector<128x1xf32>
    tpu.vector_store %arg6[%c0_9, %c0_10], %19 {strides = array<i32>} : memref<128x1xf32, #tpu.memory_space<vmem>>, vector<128x1xf32>,
    %c0_11 = arith.constant 0 : index
    %c0_12 = arith.constant 0 : index
    %21 = vector.load %arg5[%c0_11, %c0_12] : memref<128x1xf32, #tpu.memory_space<vmem>>, vector<128x1xf32>
    tpu.vector_store %arg5[%c0_11, %c0_12], %9 {strides = array<i32>} : memref<128x1xf32, #tpu.memory_space<vmem>>, vector<128x1xf32>,
    %c32_i32 = arith.constant 32 : i32
    %22 = arith.muli %arg1, %c32_i32 : i32
    %23 = vector.broadcast %22 : i32 to vector<128x1xi32>
    %24 = arith.subi %4, %23 : vector<128x1xi32>
    %25 = vector.broadcast %24 : vector<128x1xi32> to vector<128x32xi32>
    %26 = arith.cmpi eq, %5, %25 : vector<128x32xi32>
    %cst_13 = arith.constant 0.000000e+00 : f32
    %27 = vector.broadcast %cst_13 : f32 to vector<128x32xf32>
    %28 = arith.select %26, %3, %27 : vector<128x32xi1>, vector<128x32xf32>
    %cst_14 = arith.constant dense<0.000000e+00> : vector<128xf32>
    %29 = vector.multi_reduction <add>, %28, %cst_14 [1] : vector<128x32xf32> to vector<128xf32>
    %30 = vector.shape_cast %29 : vector<128xf32> to vector<128x1xf32>
    %cst_15 = arith.constant dense<0.000000e+00> : vector<128xf32>
    %31 = vector.multi_reduction <add>, %3, %cst_15 [1] : vector<128x32xf32> to vector<128xf32>
    %32 = vector.shape_cast %31 : vector<128xf32> to vector<128x1xf32>
    %c0_16 = arith.constant 0 : index
    %c0_17 = arith.constant 0 : index
    %33 = vector.load %arg7[%c0_16, %c0_17] : memref<128x1xf32, #tpu.memory_space<vmem>>, vector<128x1xf32>
    %cst_18 = arith.constant 3.125000e-03 : f32
    %34 = vector.broadcast %cst_18 : f32 to vector<128x1xf32>
    %35 = arith.mulf %34, %32 : vector<128x1xf32>
    %cst_19 = arith.constant 0.899999976 : f32
    %36 = vector.broadcast %cst_19 : f32 to vector<128x1xf32>
    %37 = arith.mulf %36, %30 : vector<128x1xf32>
    %38 = arith.addf %35, %37 : vector<128x1xf32>
    %39 = arith.addf %33, %38 : vector<128x1xf32>
    %c0_20 = arith.constant 0 : index
    %c0_21 = arith.constant 0 : index
    %40 = vector.load %arg7[%c0_20, %c0_21] : memref<128x1xf32, #tpu.memory_space<vmem>>, vector<128x1xf32>
    tpu.vector_store %arg7[%c0_20, %c0_21], %39 {strides = array<i32>} : memref<128x1xf32, #tpu.memory_space<vmem>>, vector<128x1xf32>,
    %c0_i32_22 = arith.constant 0 : i32
    %41 = arith.cmpi eq, %arg1, %c0_i32_22 : i32
    %42 = arith.extui %41 : i1 to i32
    %c0_i32_23 = arith.constant 0 : i32
    %43 = arith.cmpi ne, %42, %c0_i32_23 : i32
    scf.if %43 {
      %c0_24 = arith.constant 0 : index
      %c0_25 = arith.constant 0 : index
      %44 = vector.load %arg5[%c0_24, %c0_25] : memref<128x1xf32, #tpu.memory_space<vmem>>, vector<128x1xf32>
      %c0_26 = arith.constant 0 : index
      %c0_27 = arith.constant 0 : index
      %45 = vector.load %arg6[%c0_26, %c0_27] : memref<128x1xf32, #tpu.memory_space<vmem>>, vector<128x1xf32>
      %46 = math.log %45 : vector<128x1xf32>
      %47 = arith.addf %44, %46 : vector<128x1xf32>
      %c0_28 = arith.constant 0 : index
      %c0_29 = arith.constant 0 : index
      %48 = vector.load %arg7[%c0_28, %c0_29] : memref<128x1xf32, #tpu.memory_space<vmem>>, vector<128x1xf32>
      %49 = arith.subf %47, %48 : vector<128x1xf32>
      %50 = tpu.transpose %49, [1, 0] : vector<128x1xf32> -> vector<1x128xf32>
      %c128_i32 = arith.constant 128 : i32
      %51 = arith.muli %arg0, %c128_i32 : i32
      %52 = tpu.iota {dimensions = array<i32: 1>} : vector<1x128xi32>
      %53 = vector.broadcast %51 : i32 to vector<1x128xi32>
      %54 = arith.addi %53, %52 : vector<1x128xi32>
      %c8_i32 = arith.constant 8 : i32
      %55 = vector.broadcast %c8_i32 : i32 to vector<1x128xi32>
      %56 = arith.cmpi slt, %54, %55 : vector<1x128xi32>
      %cst_30 = arith.constant 0.000000e+00 : f32
      %57 = vector.broadcast %cst_30 : f32 to vector<1x128xf32>
      %58 = arith.select %56, %50, %57 : vector<1x128xi1>, vector<1x128xf32>
      %c0_31 = arith.constant 0 : index
      %c0_32 = arith.constant 0 : index
      %59 = vector.load %arg4[%c0_31, %c0_32] : memref<1x128xf32, #tpu.memory_space<vmem>>, vector<1x128xf32>
      tpu.vector_store %arg4[%c0_31, %c0_32], %58 {strides = array<i32>} : memref<1x128xf32, #tpu.memory_space<vmem>>, vector<1x128xf32>,
    } else {
    }
    return
  }
  func.func @transform_0(%arg0: i32, %arg1: i32) -> (i32, i32) {
    %c0_i32 = arith.constant 0 : i32
    return %arg0, %arg1 : i32, i32
  }
  func.func @transform_1(%arg0: i32, %arg1: i32) -> (i32, i32) {
    %c0_i32 = arith.constant 0 : i32
    %c0_i32_0 = arith.constant 0 : i32
    return %arg0, %c0_i32 : i32, i32
  }
  func.func @transform_2(%arg0: i32, %arg1: i32) -> (i32, i32) {
    %c0_i32 = arith.constant 0 : i32
    %c0_i32_0 = arith.constant 0 : i32
    return %c0_i32, %arg0 : i32, i32
  }
}

</mosaic_0001>

<llo_original>
// kernel: tpu_custom_call.1
$region0: #{tpu_custom_call.1}
  #allocation0 [shape = 'u32[]', space=smem, size = 0x4, offset = 0x4, fixed_abs, tag = 'smem constant byte address 0x4 - core index']
  #allocation1 [shape = 'u32[72,128]{1,0:T(1,128)}', space=vmem, size = 0x9000, scoped, tag = 'internal scratch']
  #allocation2 [shape = 'f32[128,1]{1,0:T(8,128)}', space=vmem, size = 0x10000, scoped, tag = 'scratch operand']
  #allocation3 [shape = 'f32[128,1]{1,0:T(8,128)}', space=vmem, size = 0x10000, scoped, tag = 'scratch operand']
  #allocation4 [shape = 'f32[128,1]{1,0:T(8,128)}', space=vmem, size = 0x10000, scoped, tag = 'scratch operand']
  %s0 = inlined_call_operand.vmem [shape: f32[8,32], index: 0, kind: input, shape index: {}]
  %s1 = inlined_call_operand.vmem [shape: s32[8,1], index: 1, kind: input, shape index: {}]
  %s2 = inlined_call_operand.hbm [shape: f32[1,128], index: 2, kind: output, shape index: {}]
  %s3 = sld [smem:[#allocation0]]
  $region26: #{tpu_custom_call.1} parent=0
    _
  %s5 = ssub.s32 1, %s3
  %s6 = scalar_select 0, %s5, %s3
  $region1: #{tpu_custom_call.1} parent=0
    #allocation5 [shape = 'u8[512]{0}', space=vmem, size = 0x400, scoped, tag = 'output window, operand 0, single buffered']
    #allocation6 [shape = 's32[1]{0}', space=sflag, size = 0x4, scoped, tag = 'scoped memory for tpu_custom_call.1']
    %7 = vsyncpa [#allocation6], 0
    // Predicated region
    $region2: #{tpu_custom_call.1} parent=1 // pred_check
      _
    $region3: #{tpu_custom_call.1} parent=1 // pred_check_branch
      %9 = sbr.rel (0) target = $region5
    $region4: #{tpu_custom_call.1} parent=1 // pred_region
      _
    $region5: #{tpu_custom_call.1} parent=1 // pred_fallthru
      _
    // Predicated region
    $region6: #{tpu_custom_call.1} parent=1 // pred_check
      _
    $region7: #{tpu_custom_call.1} parent=1 // pred_check_branch
      %11 = sbr.rel (0) target = $region9
    $region8: #{tpu_custom_call.1} parent=1 // pred_region
      _
    $region9: #{tpu_custom_call.1} parent=1 // pred_fallthru
      _
    %p12 = scmp.eq.s32.totalorder 0, 0
    // Predicated region
    $region10: #{tpu_custom_call.1} parent=1 // pred_check
      %p13 = pneg %p12
    $region11: #{tpu_custom_call.1} parent=1 // pred_check_branch
      %15 = sbr.rel (%p13) target = $region13
    $region12: #{tpu_custom_call.1} parent=1 // pred_region
      %vm16 = vcmask 7168
      %17 = vst.msk [vmem:[#allocation2] sm:$0xff] %vm16, -inf
      %18 = vst.msk [vmem:[#allocation2 + $0x8] sm:$0xff] %vm16, -inf
      %19 = vst.msk [vmem:[#allocation2 + $0x10] sm:$0xff] %vm16, -inf
      %20 = vst.msk [vmem:[#allocation2 + $0x18] sm:$0xff] %vm16, -inf
      %21 = vst.msk [vmem:[#allocation2 + $0x20] sm:$0xff] %vm16, -inf
      %22 = vst.msk [vmem:[#allocation2 + $0x28] sm:$0xff] %vm16, -inf
      %23 = vst.msk [vmem:[#allocation2 + $0x30] sm:$0xff] %vm16, -inf
      %24 = vst.msk [vmem:[#allocation2 + $0x38] sm:$0xff] %vm16, -inf
      %25 = vst.msk [vmem:[#allocation2 + $0x40] sm:$0xff] %vm16, -inf
      %26 = vst.msk [vmem:[#allocation2 + $0x48] sm:$0xff] %vm16, -inf
      %27 = vst.msk [vmem:[#allocation2 + $0x50] sm:$0xff] %vm16, -inf
      %28 = vst.msk [vmem:[#allocation2 + $0x58] sm:$0xff] %vm16, -inf
      %29 = vst.msk [vmem:[#allocation2 + $0x60] sm:$0xff] %vm16, -inf
      %30 = vst.msk [vmem:[#allocation2 + $0x68] sm:$0xff] %vm16, -inf
      %31 = vst.msk [vmem:[#allocation2 + $0x70] sm:$0xff] %vm16, -inf
      %32 = vst.msk [vmem:[#allocation2 + $0x78] sm:$0xff] %vm16, -inf
      %33 = vst.msk [vmem:[#allocation3] sm:$0xff] %vm16, 0.0
      %34 = vst.msk [vmem:[#allocation3 + $0x8] sm:$0xff] %vm16, 0.0
      %35 = vst.msk [vmem:[#allocation3 + $0x10] sm:$0xff] %vm16, 0.0
      %36 = vst.msk [vmem:[#allocation3 + $0x18] sm:$0xff] %vm16, 0.0
      %37 = vst.msk [vmem:[#allocation3 + $0x20] sm:$0xff] %vm16, 0.0
      %38 = vst.msk [vmem:[#allocation3 + $0x28] sm:$0xff] %vm16, 0.0
      %39 = vst.msk [vmem:[#allocation3 + $0x30] sm:$0xff] %vm16, 0.0
      %40 = vst.msk [vmem:[#allocation3 + $0x38] sm:$0xff] %vm16, 0.0
      %41 = vst.msk [vmem:[#allocation3 + $0x40] sm:$0xff] %vm16, 0.0
      %42 = vst.msk [vmem:[#allocation3 + $0x48] sm:$0xff] %vm16, 0.0
      %43 = vst.msk [vmem:[#allocation3 + $0x50] sm:$0xff] %vm16, 0.0
      %44 = vst.msk [vmem:[#allocation3 + $0x58] sm:$0xff] %vm16, 0.0
      %45 = vst.msk [vmem:[#allocation3 + $0x60] sm:$0xff] %vm16, 0.0
      %46 = vst.msk [vmem:[#allocation3 + $0x68] sm:$0xff] %vm16, 0.0
      %47 = vst.msk [vmem:[#allocation3 + $0x70] sm:$0xff] %vm16, 0.0
      %48 = vst.msk [vmem:[#allocation3 + $0x78] sm:$0xff] %vm16, 0.0
      %49 = vst.msk [vmem:[#allocation4] sm:$0xff] %vm16, 0.0
      %50 = vst.msk [vmem:[#allocation4 + $0x8] sm:$0xff] %vm16, 0.0
      %51 = vst.msk [vmem:[#allocation4 + $0x10] sm:$0xff] %vm16, 0.0
      %52 = vst.msk [vmem:[#allocation4 + $0x18] sm:$0xff] %vm16, 0.0
      %53 = vst.msk [vmem:[#allocation4 + $0x20] sm:$0xff] %vm16, 0.0
      %54 = vst.msk [vmem:[#allocation4 + $0x28] sm:$0xff] %vm16, 0.0
      %55 = vst.msk [vmem:[#allocation4 + $0x30] sm:$0xff] %vm16, 0.0
      %56 = vst.msk [vmem:[#allocation4 + $0x38] sm:$0xff] %vm16, 0.0
      %57 = vst.msk [vmem:[#allocation4 + $0x40] sm:$0xff] %vm16, 0.0
      %58 = vst.msk [vmem:[#allocation4 + $0x48] sm:$0xff] %vm16, 0.0
      %59 = vst.msk [vmem:[#allocation4 + $0x50] sm:$0xff] %vm16, 0.0
      %60 = vst.msk [vmem:[#allocation4 + $0x58] sm:$0xff] %vm16, 0.0
      %61 = vst.msk [vmem:[#allocation4 + $0x60] sm:$0xff] %vm16, 0.0
      %62 = vst.msk [vmem:[#allocation4 + $0x68] sm:$0xff] %vm16, 0.0
      %63 = vst.msk [vmem:[#allocation4 + $0x70] sm:$0xff] %vm16, 0.0
      %64 = vst.msk [vmem:[#allocation4 + $0x78] sm:$0xff] %vm16, 0.0
    $region13: #{tpu_custom_call.1} parent=1 // pred_fallthru
      _
    %v65 = vld [vmem:[%s0] sm:$0xff]
    %v66 = vld [vmem:[%s0 + $0x8] sm:$0xff]
    %v67 = vld [vmem:[%s0 + $0x10] sm:$0xff]
    %v68 = vld [vmem:[%s0 + $0x18] sm:$0xff]
    %v69 = vld [vmem:[%s0 + $0x20] sm:$0xff]
    %v70 = vld [vmem:[%s0 + $0x28] sm:$0xff]
    %v71 = vld [vmem:[%s0 + $0x30] sm:$0xff]
    %v72 = vld [vmem:[%s0 + $0x38] sm:$0xff]
    %v73 = vld [vmem:[%s0 + $0x40] sm:$0xff]
    %v74 = vld [vmem:[%s0 + $0x48] sm:$0xff]
    %v75 = vld [vmem:[%s0 + $0x50] sm:$0xff]
    %v76 = vld [vmem:[%s0 + $0x58] sm:$0xff]
    %v77 = vld [vmem:[%s0 + $0x60] sm:$0xff]
    %v78 = vld [vmem:[%s0 + $0x68] sm:$0xff]
    %v79 = vld [vmem:[%s0 + $0x70] sm:$0xff]
    %v80 = vld [vmem:[%s0 + $0x78] sm:$0xff]
    %v81 = vld [vmem:[%s1] sm:$0xff]
    %v82 = vld [vmem:[%s1 + $0x8] sm:$0xff]
    %v83 = vld [vmem:[%s1 + $0x10] sm:$0xff]
    %v84 = vld [vmem:[%s1 + $0x18] sm:$0xff]
    %v85 = vld [vmem:[%s1 + $0x20] sm:$0xff]
    %v86 = vld [vmem:[%s1 + $0x28] sm:$0xff]
    %v87 = vld [vmem:[%s1 + $0x30] sm:$0xff]
    %v88 = vld [vmem:[%s1 + $0x38] sm:$0xff]
    %v89 = vld [vmem:[%s1 + $0x40] sm:$0xff]
    %v90 = vld [vmem:[%s1 + $0x48] sm:$0xff]
    %v91 = vld [vmem:[%s1 + $0x50] sm:$0xff]
    %v92 = vld [vmem:[%s1 + $0x58] sm:$0xff]
    %v93 = vld [vmem:[%s1 + $0x60] sm:$0xff]
    %v94 = vld [vmem:[%s1 + $0x68] sm:$0xff]
    %v95 = vld [vmem:[%s1 + $0x70] sm:$0xff]
    %v96 = vld [vmem:[%s1 + $0x78] sm:$0xff]
    %v97 = vlaneseq
    %v98 = vand.u32 %v97, 127
    %vm99 = vcmask 261120
    %v100 = vsel %vm99, %v65, -inf
    %101 = vmax.xlane.f32.xlu0 %v100
    %v102 = vpop.xlane.xlu0 %101
    %v103 = vsel %vm99, %v66, -inf
    %104 = vmax.xlane.f32.xlu0 %v103
    %v105 = vpop.xlane.xlu0 %104
    %v106 = vsel %vm99, %v67, -inf
    %107 = vmax.xlane.f32.xlu0 %v106
    %v108 = vpop.xlane.xlu0 %107
    %v109 = vsel %vm99, %v68, -inf
    %110 = vmax.xlane.f32.xlu0 %v109
    %v111 = vpop.xlane.xlu0 %110
    %v112 = vsel %vm99, %v69, -inf
    %113 = vmax.xlane.f32.xlu0 %v112
    %v114 = vpop.xlane.xlu0 %113
    %v115 = vsel %vm99, %v70, -inf
    %116 = vmax.xlane.f32.xlu0 %v115
    %v117 = vpop.xlane.xlu0 %116
    %v118 = vsel %vm99, %v71, -inf
    %119 = vmax.xlane.f32.xlu0 %v118
    %v120 = vpop.xlane.xlu0 %119
    %v121 = vsel %vm99, %v72, -inf
    %122 = vmax.xlane.f32.xlu0 %v121
    %v123 = vpop.xlane.xlu0 %122
    %v124 = vsel %vm99, %v73, -inf
    %125 = vmax.xlane.f32.xlu0 %v124
    %v126 = vpop.xlane.xlu0 %125
    %v127 = vsel %vm99, %v74, -inf
    %128 = vmax.xlane.f32.xlu0 %v127
    %v129 = vpop.xlane.xlu0 %128
    %v130 = vsel %vm99, %v75, -inf
    %131 = vmax.xlane.f32.xlu0 %v130
    %v132 = vpop.xlane.xlu0 %131
    %v133 = vsel %vm99, %v76, -inf
    %134 = vmax.xlane.f32.xlu0 %v133
    %v135 = vpop.xlane.xlu0 %134
    %v136 = vsel %vm99, %v77, -inf
    %137 = vmax.xlane.f32.xlu0 %v136
    %v138 = vpop.xlane.xlu0 %137
    %v139 = vsel %vm99, %v78, -inf
    %140 = vmax.xlane.f32.xlu0 %v139
    %v141 = vpop.xlane.xlu0 %140
    %v142 = vsel %vm99, %v79, -inf
    %143 = vmax.xlane.f32.xlu0 %v142
    %v144 = vpop.xlane.xlu0 %143
    %v145 = vsel %vm99, %v80, -inf
    %146 = vmax.xlane.f32.xlu0 %v145
    %v147 = vpop.xlane.xlu0 %146
    %v148 = vld [vmem:[#allocation2] sm:$0xff]
    %v149 = vld [vmem:[#allocation2 + $0x8] sm:$0xff]
    %v150 = vld [vmem:[#allocation2 + $0x10] sm:$0xff]
    %v151 = vld [vmem:[#allocation2 + $0x18] sm:$0xff]
    %v152 = vld [vmem:[#allocation2 + $0x20] sm:$0xff]
    %v153 = vld [vmem:[#allocation2 + $0x28] sm:$0xff]
    %v154 = vld [vmem:[#allocation2 + $0x30] sm:$0xff]
    %v155 = vld [vmem:[#allocation2 + $0x38] sm:$0xff]
    %v156 = vld [vmem:[#allocation2 + $0x40] sm:$0xff]
    %v157 = vld [vmem:[#allocation2 + $0x48] sm:$0xff]
    %v158 = vld [vmem:[#allocation2 + $0x50] sm:$0xff]
    %v159 = vld [vmem:[#allocation2 + $0x58] sm:$0xff]
    %v160 = vld [vmem:[#allocation2 + $0x60] sm:$0xff]
    %v161 = vld [vmem:[#allocation2 + $0x68] sm:$0xff]
    %v162 = vld [vmem:[#allocation2 + $0x70] sm:$0xff]
    %v163 = vld [vmem:[#allocation2 + $0x78] sm:$0xff]
    %v164 = vmax.f32 %v148, %v102
    %v165 = vmax.f32 %v149, %v105
    %v166 = vmax.f32 %v150, %v108
    %v167 = vmax.f32 %v151, %v111
    %v168 = vmax.f32 %v152, %v114
    %v169 = vmax.f32 %v153, %v117
    %v170 = vmax.f32 %v154, %v120
    %v171 = vmax.f32 %v155, %v123
    %v172 = vmax.f32 %v156, %v126
    %v173 = vmax.f32 %v157, %v129
    %v174 = vmax.f32 %v158, %v132
    %v175 = vmax.f32 %v159, %v135
    %v176 = vmax.f32 %v160, %v138
    %v177 = vmax.f32 %v161, %v141
    %v178 = vmax.f32 %v162, %v144
    %v179 = vmax.f32 %v163, %v147
    %181 = vset.pattern.permute.xlu0 0
    %182 = vperm.xlu0 %181, %v164
    %v183 = vpop.permute.xlu0 %182
    %186 = vset.pattern.permute.xlu0 0
    %187 = vperm.xlu0 %186, %v165
    %v188 = vpop.permute.xlu0 %187
    %191 = vset.pattern.permute.xlu0 0
    %192 = vperm.xlu0 %191, %v166
    %v193 = vpop.permute.xlu0 %192
    %196 = vset.pattern.permute.xlu0 0
    %197 = vperm.xlu0 %196, %v167
    %v198 = vpop.permute.xlu0 %197
    %201 = vset.pattern.permute.xlu0 0
    %202 = vperm.xlu0 %201, %v168
    %v203 = vpop.permute.xlu0 %202
    %206 = vset.pattern.permute.xlu0 0
    %207 = vperm.xlu0 %206, %v169
    %v208 = vpop.permute.xlu0 %207
    %211 = vset.pattern.permute.xlu0 0
    %212 = vperm.xlu0 %211, %v170
    %v213 = vpop.permute.xlu0 %212
    %216 = vset.pattern.permute.xlu0 0
    %217 = vperm.xlu0 %216, %v171
    %v218 = vpop.permute.xlu0 %217
    %221 = vset.pattern.permute.xlu0 0
    %222 = vperm.xlu0 %221, %v172
    %v223 = vpop.permute.xlu0 %222
    %226 = vset.pattern.permute.xlu0 0
    %227 = vperm.xlu0 %226, %v173
    %v228 = vpop.permute.xlu0 %227
    %231 = vset.pattern.permute.xlu0 0
    %232 = vperm.xlu0 %231, %v174
    %v233 = vpop.permute.xlu0 %232
    %236 = vset.pattern.permute.xlu0 0
    %237 = vperm.xlu0 %236, %v175
    %v238 = vpop.permute.xlu0 %237
    %241 = vset.pattern.permute.xlu0 0
    %242 = vperm.xlu0 %241, %v176
    %v243 = vpop.permute.xlu0 %242
    %246 = vset.pattern.permute.xlu0 0
    %247 = vperm.xlu0 %246, %v177
    %v248 = vpop.permute.xlu0 %247
    %251 = vset.pattern.permute.xlu0 0
    %252 = vperm.xlu0 %251, %v178
    %v253 = vpop.permute.xlu0 %252
    %256 = vset.pattern.permute.xlu0 0
    %257 = vperm.xlu0 %256, %v179
    %v258 = vpop.permute.xlu0 %257
    %v260 = vsub.f32 %v65, %v183
    %v261 = vsub.f32 %v66, %v188
    %v262 = vsub.f32 %v67, %v193
    %v263 = vsub.f32 %v68, %v198
    %v264 = vsub.f32 %v69, %v203
    %v265 = vsub.f32 %v70, %v208
    %v266 = vsub.f32 %v71, %v213
    %v267 = vsub.f32 %v72, %v218
    %v268 = vsub.f32 %v73, %v223
    %v269 = vsub.f32 %v74, %v228
    %v270 = vsub.f32 %v75, %v233
    %v271 = vsub.f32 %v76, %v238
    %v272 = vsub.f32 %v77, %v243
    %v273 = vsub.f32 %v78, %v248
    %v274 = vsub.f32 %v79, %v253
    %v275 = vsub.f32 %v80, %v258
    %v276 = vmul.f32 %v260, 1.442695
    %v277 = vpow.pop %v276
    %v278 = vmul.f32 %v261, 1.442695
    %v279 = vpow.pop %v278
    %v280 = vmul.f32 %v262, 1.442695
    %v281 = vpow.pop %v280
    %v282 = vmul.f32 %v263, 1.442695
    %v283 = vpow.pop %v282
    %v284 = vmul.f32 %v264, 1.442695
    %v285 = vpow.pop %v284
    %v286 = vmul.f32 %v265, 1.442695
    %v287 = vpow.pop %v286
    %v288 = vmul.f32 %v266, 1.442695
    %v289 = vpow.pop %v288
    %v290 = vmul.f32 %v267, 1.442695
    %v291 = vpow.pop %v290
    %v292 = vmul.f32 %v268, 1.442695
    %v293 = vpow.pop %v292
    %v294 = vmul.f32 %v269, 1.442695
    %v295 = vpow.pop %v294
    %v296 = vmul.f32 %v270, 1.442695
    %v297 = vpow.pop %v296
    %v298 = vmul.f32 %v271, 1.442695
    %v299 = vpow.pop %v298
    %v300 = vmul.f32 %v272, 1.442695
    %v301 = vpow.pop %v300
    %v302 = vmul.f32 %v273, 1.442695
    %v303 = vpow.pop %v302
    %v304 = vmul.f32 %v274, 1.442695
    %v305 = vpow.pop %v304
    %v306 = vmul.f32 %v275, 1.442695
    %v307 = vpow.pop %v306
    %v308 = vsel %vm99, %v277, 0.0
    %309 = vadd.xlane.f32.xlu0 %v308
    %v310 = vpop.xlane.xlu0 %309
    %v311 = vsel %vm99, %v279, 0.0
    %312 = vadd.xlane.f32.xlu0 %v311
    %v313 = vpop.xlane.xlu0 %312
    %v314 = vsel %vm99, %v281, 0.0
    %315 = vadd.xlane.f32.xlu0 %v314
    %v316 = vpop.xlane.xlu0 %315
    %v317 = vsel %vm99, %v283, 0.0
    %318 = vadd.xlane.f32.xlu0 %v317
    %v319 = vpop.xlane.xlu0 %318
    %v320 = vsel %vm99, %v285, 0.0
    %321 = vadd.xlane.f32.xlu0 %v320
    %v322 = vpop.xlane.xlu0 %321
    %v323 = vsel %vm99, %v287, 0.0
    %324 = vadd.xlane.f32.xlu0 %v323
    %v325 = vpop.xlane.xlu0 %324
    %v326 = vsel %vm99, %v289, 0.0
    %327 = vadd.xlane.f32.xlu0 %v326
    %v328 = vpop.xlane.xlu0 %327
    %v329 = vsel %vm99, %v291, 0.0
    %330 = vadd.xlane.f32.xlu0 %v329
    %v331 = vpop.xlane.xlu0 %330
    %v332 = vsel %vm99, %v293, 0.0
    %333 = vadd.xlane.f32.xlu0 %v332
    %v334 = vpop.xlane.xlu0 %333
    %v335 = vsel %vm99, %v295, 0.0
    %336 = vadd.xlane.f32.xlu0 %v335
    %v337 = vpop.xlane.xlu0 %336
    %v338 = vsel %vm99, %v297, 0.0
    %339 = vadd.xlane.f32.xlu0 %v338
    %v340 = vpop.xlane.xlu0 %339
    %v341 = vsel %vm99, %v299, 0.0
    %342 = vadd.xlane.f32.xlu0 %v341
    %v343 = vpop.xlane.xlu0 %342
    %v344 = vsel %vm99, %v301, 0.0
    %345 = vadd.xlane.f32.xlu0 %v344
    %v346 = vpop.xlane.xlu0 %345
    %v347 = vsel %vm99, %v303, 0.0
    %348 = vadd.xlane.f32.xlu0 %v347
    %v349 = vpop.xlane.xlu0 %348
    %v350 = vsel %vm99, %v305, 0.0
    %351 = vadd.xlane.f32.xlu0 %v350
    %v352 = vpop.xlane.xlu0 %351
    %v353 = vsel %vm99, %v307, 0.0
    %354 = vadd.xlane.f32.xlu0 %v353
    %v355 = vpop.xlane.xlu0 %354
    %v356 = vld [vmem:[#allocation3] sm:$0xff]
    %v357 = vld [vmem:[#allocation3 + $0x8] sm:$0xff]
    %v358 = vld [vmem:[#allocation3 + $0x10] sm:$0xff]
    %v359 = vld [vmem:[#allocation3 + $0x18] sm:$0xff]
    %v360 = vld [vmem:[#allocation3 + $0x20] sm:$0xff]
    %v361 = vld [vmem:[#allocation3 + $0x28] sm:$0xff]
    %v362 = vld [vmem:[#allocation3 + $0x30] sm:$0xff]
    %v363 = vld [vmem:[#allocation3 + $0x38] sm:$0xff]
    %v364 = vld [vmem:[#allocation3 + $0x40] sm:$0xff]
    %v365 = vld [vmem:[#allocation3 + $0x48] sm:$0xff]
    %v366 = vld [vmem:[#allocation3 + $0x50] sm:$0xff]
    %v367 = vld [vmem:[#allocation3 + $0x58] sm:$0xff]
    %v368 = vld [vmem:[#allocation3 + $0x60] sm:$0xff]
    %v369 = vld [vmem:[#allocation3 + $0x68] sm:$0xff]
    %v370 = vld [vmem:[#allocation3 + $0x70] sm:$0xff]
    %v371 = vld [vmem:[#allocation3 + $0x78] sm:$0xff]
    %v372 = vsub.f32 %v148, %v164
    %v373 = vsub.f32 %v149, %v165
    %v374 = vsub.f32 %v150, %v166
    %v375 = vsub.f32 %v151, %v167
    %v376 = vsub.f32 %v152, %v168
    %v377 = vsub.f32 %v153, %v169
    %v378 = vsub.f32 %v154, %v170
    %v379 = vsub.f32 %v155, %v171
    %v380 = vsub.f32 %v156, %v172
    %v381 = vsub.f32 %v157, %v173
    %v382 = vsub.f32 %v158, %v174
    %v383 = vsub.f32 %v159, %v175
    %v384 = vsub.f32 %v160, %v176
    %v385 = vsub.f32 %v161, %v177
    %v386 = vsub.f32 %v162, %v178
    %v387 = vsub.f32 %v163, %v179
    %v388 = vmul.f32 %v372, 1.442695
    %v389 = vpow.pop %v388
    %v390 = vmul.f32 %v373, 1.442695
    %v391 = vpow.pop %v390
    %v392 = vmul.f32 %v374, 1.442695
    %v393 = vpow.pop %v392
    %v394 = vmul.f32 %v375, 1.442695
    %v395 = vpow.pop %v394
    %v396 = vmul.f32 %v376, 1.442695
    %v397 = vpow.pop %v396
    %v398 = vmul.f32 %v377, 1.442695
    %v399 = vpow.pop %v398
    %v400 = vmul.f32 %v378, 1.442695
    %v401 = vpow.pop %v400
    %v402 = vmul.f32 %v379, 1.442695
    %v403 = vpow.pop %v402
    %v404 = vmul.f32 %v380, 1.442695
    %v405 = vpow.pop %v404
    %v406 = vmul.f32 %v381, 1.442695
    %v407 = vpow.pop %v406
    %v408 = vmul.f32 %v382, 1.442695
    %v409 = vpow.pop %v408
    %v410 = vmul.f32 %v383, 1.442695
    %v411 = vpow.pop %v410
    %v412 = vmul.f32 %v384, 1.442695
    %v413 = vpow.pop %v412
    %v414 = vmul.f32 %v385, 1.442695
    %v415 = vpow.pop %v414
    %v416 = vmul.f32 %v386, 1.442695
    %v417 = vpow.pop %v416
    %v418 = vmul.f32 %v387, 1.442695
    %v419 = vpow.pop %v418
    %v420 = vmul.f32 %v356, %v389
    %v421 = vmul.f32 %v357, %v391
    %v422 = vmul.f32 %v358, %v393
    %v423 = vmul.f32 %v359, %v395
    %v424 = vmul.f32 %v360, %v397
    %v425 = vmul.f32 %v361, %v399
    %v426 = vmul.f32 %v362, %v401
    %v427 = vmul.f32 %v363, %v403
    %v428 = vmul.f32 %v364, %v405
    %v429 = vmul.f32 %v365, %v407
    %v430 = vmul.f32 %v366, %v409
    %v431 = vmul.f32 %v367, %v411
    %v432 = vmul.f32 %v368, %v413
    %v433 = vmul.f32 %v369, %v415
    %v434 = vmul.f32 %v370, %v417
    %v435 = vmul.f32 %v371, %v419
    %v436 = vadd.f32 %v420, %v310
    %v437 = vadd.f32 %v421, %v313
    %v438 = vadd.f32 %v422, %v316
    %v439 = vadd.f32 %v423, %v319
    %v440 = vadd.f32 %v424, %v322
    %v441 = vadd.f32 %v425, %v325
    %v442 = vadd.f32 %v426, %v328
    %v443 = vadd.f32 %v427, %v331
    %v444 = vadd.f32 %v428, %v334
    %v445 = vadd.f32 %v429, %v337
    %v446 = vadd.f32 %v430, %v340
    %v447 = vadd.f32 %v431, %v343
    %v448 = vadd.f32 %v432, %v346
    %v449 = vadd.f32 %v433, %v349
    %v450 = vadd.f32 %v434, %v352
    %v451 = vadd.f32 %v435, %v355
    %vm452 = vcmask 7168
    %453 = vst.msk [vmem:[#allocation3] sm:$0xff] %vm452, %v436
    %454 = vst.msk [vmem:[#allocation3 + $0x8] sm:$0xff] %vm452, %v437
    %455 = vst.msk [vmem:[#allocation3 + $0x10] sm:$0xff] %vm452, %v438
    %456 = vst.msk [vmem:[#allocation3 + $0x18] sm:$0xff] %vm452, %v439
    %457 = vst.msk [vmem:[#allocation3 + $0x20] sm:$0xff] %vm452, %v440
    %458 = vst.msk [vmem:[#allocation3 + $0x28] sm:$0xff] %vm452, %v441
    %459 = vst.msk [vmem:[#allocation3 + $0x30] sm:$0xff] %vm452, %v442
    %460 = vst.msk [vmem:[#allocation3 + $0x38] sm:$0xff] %vm452, %v443
    %461 = vst.msk [vmem:[#allocation3 + $0x40] sm:$0xff] %vm452, %v444
    %462 = vst.msk [vmem:[#allocation3 + $0x48] sm:$0xff] %vm452, %v445
    %463 = vst.msk [vmem:[#allocation3 + $0x50] sm:$0xff] %vm452, %v446
    %464 = vst.msk [vmem:[#allocation3 + $0x58] sm:$0xff] %vm452, %v447
    %465 = vst.msk [vmem:[#allocation3 + $0x60] sm:$0xff] %vm452, %v448
    %466 = vst.msk [vmem:[#allocation3 + $0x68] sm:$0xff] %vm452, %v449
    %467 = vst.msk [vmem:[#allocation3 + $0x70] sm:$0xff] %vm452, %v450
    %468 = vst.msk [vmem:[#allocation3 + $0x78] sm:$0xff] %vm452, %v451
    %469 = vst.msk [vmem:[#allocation2] sm:$0xff] %vm452, %v164
    %470 = vst.msk [vmem:[#allocation2 + $0x8] sm:$0xff] %vm452, %v165
    %471 = vst.msk [vmem:[#allocation2 + $0x10] sm:$0xff] %vm452, %v166
    %472 = vst.msk [vmem:[#allocation2 + $0x18] sm:$0xff] %vm452, %v167
    %473 = vst.msk [vmem:[#allocation2 + $0x20] sm:$0xff] %vm452, %v168
    %474 = vst.msk [vmem:[#allocation2 + $0x28] sm:$0xff] %vm452, %v169
    %475 = vst.msk [vmem:[#allocation2 + $0x30] sm:$0xff] %vm452, %v170
    %476 = vst.msk [vmem:[#allocation2 + $0x38] sm:$0xff] %vm452, %v171
    %477 = vst.msk [vmem:[#allocation2 + $0x40] sm:$0xff] %vm452, %v172
    %478 = vst.msk [vmem:[#allocation2 + $0x48] sm:$0xff] %vm452, %v173
    %479 = vst.msk [vmem:[#allocation2 + $0x50] sm:$0xff] %vm452, %v174
    %480 = vst.msk [vmem:[#allocation2 + $0x58] sm:$0xff] %vm452, %v175
    %481 = vst.msk [vmem:[#allocation2 + $0x60] sm:$0xff] %vm452, %v176
    %482 = vst.msk [vmem:[#allocation2 + $0x68] sm:$0xff] %vm452, %v177
    %483 = vst.msk [vmem:[#allocation2 + $0x70] sm:$0xff] %vm452, %v178
    %484 = vst.msk [vmem:[#allocation2 + $0x78] sm:$0xff] %vm452, %v179
    %s485 = smul.u32 0, 32
    %v486 = vstv %s485
    %v487 = vsub.s32 %v81, %v486
    %v488 = vsub.s32 %v82, %v486
    %v489 = vsub.s32 %v83, %v486
    %v490 = vsub.s32 %v84, %v486
    %v491 = vsub.s32 %v85, %v486
    %v492 = vsub.s32 %v86, %v486
    %v493 = vsub.s32 %v87, %v486
    %v494 = vsub.s32 %v88, %v486
    %v495 = vsub.s32 %v89, %v486
    %v496 = vsub.s32 %v90, %v486
    %v497 = vsub.s32 %v91, %v486
    %v498 = vsub.s32 %v92, %v486
    %v499 = vsub.s32 %v93, %v486
    %v500 = vsub.s32 %v94, %v486
    %v501 = vsub.s32 %v95, %v486
    %v502 = vsub.s32 %v96, %v486
    %503 = vset.pattern.permute.xlu0 0
    %504 = vperm.xlu0 %503, %v487
    %v505 = vpop.permute.xlu0 %504
    %506 = vset.pattern.permute.xlu0 0
    %507 = vperm.xlu0 %506, %v488
    %v508 = vpop.permute.xlu0 %507
    %509 = vset.pattern.permute.xlu0 0
    %510 = vperm.xlu0 %509, %v489
    %v511 = vpop.permute.xlu0 %510
    %512 = vset.pattern.permute.xlu0 0
    %513 = vperm.xlu0 %512, %v490
    %v514 = vpop.permute.xlu0 %513
    %515 = vset.pattern.permute.xlu0 0
    %516 = vperm.xlu0 %515, %v491
    %v517 = vpop.permute.xlu0 %516
    %518 = vset.pattern.permute.xlu0 0
    %519 = vperm.xlu0 %518, %v492
    %v520 = vpop.permute.xlu0 %519
    %521 = vset.pattern.permute.xlu0 0
    %522 = vperm.xlu0 %521, %v493
    %v523 = vpop.permute.xlu0 %522
    %524 = vset.pattern.permute.xlu0 0
    %525 = vperm.xlu0 %524, %v494
    %v526 = vpop.permute.xlu0 %525
    %527 = vset.pattern.permute.xlu0 0
    %528 = vperm.xlu0 %527, %v495
    %v529 = vpop.permute.xlu0 %528
    %530 = vset.pattern.permute.xlu0 0
    %531 = vperm.xlu0 %530, %v496
    %v532 = vpop.permute.xlu0 %531
    %533 = vset.pattern.permute.xlu0 0
    %534 = vperm.xlu0 %533, %v497
    %v535 = vpop.permute.xlu0 %534
    %536 = vset.pattern.permute.xlu0 0
    %537 = vperm.xlu0 %536, %v498
    %v538 = vpop.permute.xlu0 %537
    %539 = vset.pattern.permute.xlu0 0
    %540 = vperm.xlu0 %539, %v499
    %v541 = vpop.permute.xlu0 %540
    %542 = vset.pattern.permute.xlu0 0
    %543 = vperm.xlu0 %542, %v500
    %v544 = vpop.permute.xlu0 %543
    %545 = vset.pattern.permute.xlu0 0
    %546 = vperm.xlu0 %545, %v501
    %v547 = vpop.permute.xlu0 %546
    %548 = vset.pattern.permute.xlu0 0
    %549 = vperm.xlu0 %548, %v502
    %v550 = vpop.permute.xlu0 %549
    %vm551 = vcmp.eq.s32.totalorder %v98, %v505
    %vm552 = vcmp.eq.s32.totalorder %v98, %v508
    %vm553 = vcmp.eq.s32.totalorder %v98, %v511
    %vm554 = vcmp.eq.s32.totalorder %v98, %v514
    %vm555 = vcmp.eq.s32.totalorder %v98, %v517
    %vm556 = vcmp.eq.s32.totalorder %v98, %v520
    %vm557 = vcmp.eq.s32.totalorder %v98, %v523
    %vm558 = vcmp.eq.s32.totalorder %v98, %v526
    %vm559 = vcmp.eq.s32.totalorder %v98, %v529
    %vm560 = vcmp.eq.s32.totalorder %v98, %v532
    %vm561 = vcmp.eq.s32.totalorder %v98, %v535
    %vm562 = vcmp.eq.s32.totalorder %v98, %v538
    %vm563 = vcmp.eq.s32.totalorder %v98, %v541
    %vm564 = vcmp.eq.s32.totalorder %v98, %v544
    %vm565 = vcmp.eq.s32.totalorder %v98, %v547
    %vm566 = vcmp.eq.s32.totalorder %v98, %v550
    %v567 = vsel %vm551, %v65, 0.0
    %v568 = vsel %vm552, %v66, 0.0
    %v569 = vsel %vm553, %v67, 0.0
    %v570 = vsel %vm554, %v68, 0.0
    %v571 = vsel %vm555, %v69, 0.0
    %v572 = vsel %vm556, %v70, 0.0
    %v573 = vsel %vm557, %v71, 0.0
    %v574 = vsel %vm558, %v72, 0.0
    %v575 = vsel %vm559, %v73, 0.0
    %v576 = vsel %vm560, %v74, 0.0
    %v577 = vsel %vm561, %v75, 0.0
    %v578 = vsel %vm562, %v76, 0.0
    %v579 = vsel %vm563, %v77, 0.0
    %v580 = vsel %vm564, %v78, 0.0
    %v581 = vsel %vm565, %v79, 0.0
    %v582 = vsel %vm566, %v80, 0.0
    %v583 = vsel %vm99, %v567, 0.0
    %584 = vadd.xlane.f32.xlu0 %v583
    %v585 = vpop.xlane.xlu0 %584
    %v586 = vsel %vm99, %v568, 0.0
    %587 = vadd.xlane.f32.xlu0 %v586
    %v588 = vpop.xlane.xlu0 %587
    %v589 = vsel %vm99, %v569, 0.0
    %590 = vadd.xlane.f32.xlu0 %v589
    %v591 = vpop.xlane.xlu0 %590
    %v592 = vsel %vm99, %v570, 0.0
    %593 = vadd.xlane.f32.xlu0 %v592
    %v594 = vpop.xlane.xlu0 %593
    %v595 = vsel %vm99, %v571, 0.0
    %596 = vadd.xlane.f32.xlu0 %v595
    %v597 = vpop.xlane.xlu0 %596
    %v598 = vsel %vm99, %v572, 0.0
    %599 = vadd.xlane.f32.xlu0 %v598
    %v600 = vpop.xlane.xlu0 %599
    %v601 = vsel %vm99, %v573, 0.0
    %602 = vadd.xlane.f32.xlu0 %v601
    %v603 = vpop.xlane.xlu0 %602
    %v604 = vsel %vm99, %v574, 0.0
    %605 = vadd.xlane.f32.xlu0 %v604
    %v606 = vpop.xlane.xlu0 %605
    %v607 = vsel %vm99, %v575, 0.0
    %608 = vadd.xlane.f32.xlu0 %v607
    %v609 = vpop.xlane.xlu0 %608
    %v610 = vsel %vm99, %v576, 0.0
    %611 = vadd.xlane.f32.xlu0 %v610
    %v612 = vpop.xlane.xlu0 %611
    %v613 = vsel %vm99, %v577, 0.0
    %614 = vadd.xlane.f32.xlu0 %v613
    %v615 = vpop.xlane.xlu0 %614
    %v616 = vsel %vm99, %v578, 0.0
    %617 = vadd.xlane.f32.xlu0 %v616
    %v618 = vpop.xlane.xlu0 %617
    %v619 = vsel %vm99, %v579, 0.0
    %620 = vadd.xlane.f32.xlu0 %v619
    %v621 = vpop.xlane.xlu0 %620
    %v622 = vsel %vm99, %v580, 0.0
    %623 = vadd.xlane.f32.xlu0 %v622
    %v624 = vpop.xlane.xlu0 %623
    %v625 = vsel %vm99, %v581, 0.0
    %626 = vadd.xlane.f32.xlu0 %v625
    %v627 = vpop.xlane.xlu0 %626
    %v628 = vsel %vm99, %v582, 0.0
    %629 = vadd.xlane.f32.xlu0 %v628
    %v630 = vpop.xlane.xlu0 %629
    %v631 = vsel %vm99, %v65, 0.0
    %632 = vadd.xlane.f32.xlu0 %v631
    %v633 = vpop.xlane.xlu0 %632
    %v634 = vsel %vm99, %v66, 0.0
    %635 = vadd.xlane.f32.xlu0 %v634
    %v636 = vpop.xlane.xlu0 %635
    %v637 = vsel %vm99, %v67, 0.0
    %638 = vadd.xlane.f32.xlu0 %v637
    %v639 = vpop.xlane.xlu0 %638
    %v640 = vsel %vm99, %v68, 0.0
    %641 = vadd.xlane.f32.xlu0 %v640
    %v642 = vpop.xlane.xlu0 %641
    %v643 = vsel %vm99, %v69, 0.0
    %644 = vadd.xlane.f32.xlu0 %v643
    %v645 = vpop.xlane.xlu0 %644
    %v646 = vsel %vm99, %v70, 0.0
    %647 = vadd.xlane.f32.xlu0 %v646
    %v648 = vpop.xlane.xlu0 %647
    %v649 = vsel %vm99, %v71, 0.0
    %650 = vadd.xlane.f32.xlu0 %v649
    %v651 = vpop.xlane.xlu0 %650
    %v652 = vsel %vm99, %v72, 0.0
    %653 = vadd.xlane.f32.xlu0 %v652
    %v654 = vpop.xlane.xlu0 %653
    %v655 = vsel %vm99, %v73, 0.0
    %656 = vadd.xlane.f32.xlu0 %v655
    %v657 = vpop.xlane.xlu0 %656
    %v658 = vsel %vm99, %v74, 0.0
    %659 = vadd.xlane.f32.xlu0 %v658
    %v660 = vpop.xlane.xlu0 %659
    %v661 = vsel %vm99, %v75, 0.0
    %662 = vadd.xlane.f32.xlu0 %v661
    %v663 = vpop.xlane.xlu0 %662
    %v664 = vsel %vm99, %v76, 0.0
    %665 = vadd.xlane.f32.xlu0 %v664
    %v666 = vpop.xlane.xlu0 %665
    %v667 = vsel %vm99, %v77, 0.0
    %668 = vadd.xlane.f32.xlu0 %v667
    %v669 = vpop.xlane.xlu0 %668
    %v670 = vsel %vm99, %v78, 0.0
    %671 = vadd.xlane.f32.xlu0 %v670
    %v672 = vpop.xlane.xlu0 %671
    %v673 = vsel %vm99, %v79, 0.0
    %674 = vadd.xlane.f32.xlu0 %v673
    %v675 = vpop.xlane.xlu0 %674
    %v676 = vsel %vm99, %v80, 0.0
    %677 = vadd.xlane.f32.xlu0 %v676
    %v678 = vpop.xlane.xlu0 %677
    %v679 = vld [vmem:[#allocation4] sm:$0xff]
    %v680 = vld [vmem:[#allocation4 + $0x8] sm:$0xff]
    %v681 = vld [vmem:[#allocation4 + $0x10] sm:$0xff]
    %v682 = vld [vmem:[#allocation4 + $0x18] sm:$0xff]
    %v683 = vld [vmem:[#allocation4 + $0x20] sm:$0xff]
    %v684 = vld [vmem:[#allocation4 + $0x28] sm:$0xff]
    %v685 = vld [vmem:[#allocation4 + $0x30] sm:$0xff]
    %v686 = vld [vmem:[#allocation4 + $0x38] sm:$0xff]
    %v687 = vld [vmem:[#allocation4 + $0x40] sm:$0xff]
    %v688 = vld [vmem:[#allocation4 + $0x48] sm:$0xff]
    %v689 = vld [vmem:[#allocation4 + $0x50] sm:$0xff]
    %v690 = vld [vmem:[#allocation4 + $0x58] sm:$0xff]
    %v691 = vld [vmem:[#allocation4 + $0x60] sm:$0xff]
    %v692 = vld [vmem:[#allocation4 + $0x68] sm:$0xff]
    %v693 = vld [vmem:[#allocation4 + $0x70] sm:$0xff]
    %v694 = vld [vmem:[#allocation4 + $0x78] sm:$0xff]
    %v695 = vmul.f32 %v633, 0.003125
    %v696 = vmul.f32 %v636, 0.003125
    %v697 = vmul.f32 %v639, 0.003125
    %v698 = vmul.f32 %v642, 0.003125
    %v699 = vmul.f32 %v645, 0.003125
    %v700 = vmul.f32 %v648, 0.003125
    %v701 = vmul.f32 %v651, 0.003125
    %v702 = vmul.f32 %v654, 0.003125
    %v703 = vmul.f32 %v657, 0.003125
    %v704 = vmul.f32 %v660, 0.003125
    %v705 = vmul.f32 %v663, 0.003125
    %v706 = vmul.f32 %v666, 0.003125
    %v707 = vmul.f32 %v669, 0.003125
    %v708 = vmul.f32 %v672, 0.003125
    %v709 = vmul.f32 %v675, 0.003125
    %v710 = vmul.f32 %v678, 0.003125
    %v711 = vmul.f32 %v585, 0.9
    %v712 = vmul.f32 %v588, 0.9
    %v713 = vmul.f32 %v591, 0.9
    %v714 = vmul.f32 %v594, 0.9
    %v715 = vmul.f32 %v597, 0.9
    %v716 = vmul.f32 %v600, 0.9
    %v717 = vmul.f32 %v603, 0.9
    %v718 = vmul.f32 %v606, 0.9
    %v719 = vmul.f32 %v609, 0.9
    %v720 = vmul.f32 %v612, 0.9
    %v721 = vmul.f32 %v615, 0.9
    %v722 = vmul.f32 %v618, 0.9
    %v723 = vmul.f32 %v621, 0.9
    %v724 = vmul.f32 %v624, 0.9
    %v725 = vmul.f32 %v627, 0.9
    %v726 = vmul.f32 %v630, 0.9
    %v727 = vadd.f32 %v695, %v711
    %v728 = vadd.f32 %v696, %v712
    %v729 = vadd.f32 %v697, %v713
    %v730 = vadd.f32 %v698, %v714
    %v731 = vadd.f32 %v699, %v715
    %v732 = vadd.f32 %v700, %v716
    %v733 = vadd.f32 %v701, %v717
    %v734 = vadd.f32 %v702, %v718
    %v735 = vadd.f32 %v703, %v719
    %v736 = vadd.f32 %v704, %v720
    %v737 = vadd.f32 %v705, %v721
    %v738 = vadd.f32 %v706, %v722
    %v739 = vadd.f32 %v707, %v723
    %v740 = vadd.f32 %v708, %v724
    %v741 = vadd.f32 %v709, %v725
    %v742 = vadd.f32 %v710, %v726
    %v743 = vadd.f32 %v679, %v727
    %v744 = vadd.f32 %v680, %v728
    %v745 = vadd.f32 %v681, %v729
    %v746 = vadd.f32 %v682, %v730
    %v747 = vadd.f32 %v683, %v731
    %v748 = vadd.f32 %v684, %v732
    %v749 = vadd.f32 %v685, %v733
    %v750 = vadd.f32 %v686, %v734
    %v751 = vadd.f32 %v687, %v735
    %v752 = vadd.f32 %v688, %v736
    %v753 = vadd.f32 %v689, %v737
    %v754 = vadd.f32 %v690, %v738
    %v755 = vadd.f32 %v691, %v739
    %v756 = vadd.f32 %v692, %v740
    %v757 = vadd.f32 %v693, %v741
    %v758 = vadd.f32 %v694, %v742
    %759 = vst.msk [vmem:[#allocation4] sm:$0xff] %vm452, %v743
    %760 = vst.msk [vmem:[#allocation4 + $0x8] sm:$0xff] %vm452, %v744
    %761 = vst.msk [vmem:[#allocation4 + $0x10] sm:$0xff] %vm452, %v745
    %762 = vst.msk [vmem:[#allocation4 + $0x18] sm:$0xff] %vm452, %v746
    %763 = vst.msk [vmem:[#allocation4 + $0x20] sm:$0xff] %vm452, %v747
    %764 = vst.msk [vmem:[#allocation4 + $0x28] sm:$0xff] %vm452, %v748
    %765 = vst.msk [vmem:[#allocation4 + $0x30] sm:$0xff] %vm452, %v749
    %766 = vst.msk [vmem:[#allocation4 + $0x38] sm:$0xff] %vm452, %v750
    %767 = vst.msk [vmem:[#allocation4 + $0x40] sm:$0xff] %vm452, %v751
    %768 = vst.msk [vmem:[#allocation4 + $0x48] sm:$0xff] %vm452, %v752
    %769 = vst.msk [vmem:[#allocation4 + $0x50] sm:$0xff] %vm452, %v753
    %770 = vst.msk [vmem:[#allocation4 + $0x58] sm:$0xff] %vm452, %v754
    %771 = vst.msk [vmem:[#allocation4 + $0x60] sm:$0xff] %vm452, %v755
    %772 = vst.msk [vmem:[#allocation4 + $0x68] sm:$0xff] %vm452, %v756
    %773 = vst.msk [vmem:[#allocation4 + $0x70] sm:$0xff] %vm452, %v757
    %774 = vst.msk [vmem:[#allocation4 + $0x78] sm:$0xff] %vm452, %v758
    // Predicated region
    $region14: #{tpu_custom_call.1} parent=1 // pred_check
      %p775 = pneg %p12
    $region15: #{tpu_custom_call.1} parent=1 // pred_check_branch
      %777 = sbr.rel (%p775) target = $region17
    $region16: #{tpu_custom_call.1} parent=1 // pred_region
      %v778 = vld [vmem:[#allocation2] sm:$0xff]
      %v779 = vld [vmem:[#allocation2 + $0x8] sm:$0xff]
      %v780 = vld [vmem:[#allocation2 + $0x10] sm:$0xff]
      %v781 = vld [vmem:[#allocation2 + $0x18] sm:$0xff]
      %v782 = vld [vmem:[#allocation2 + $0x20] sm:$0xff]
      %v783 = vld [vmem:[#allocation2 + $0x28] sm:$0xff]
      %v784 = vld [vmem:[#allocation2 + $0x30] sm:$0xff]
      %v785 = vld [vmem:[#allocation2 + $0x38] sm:$0xff]
      %v786 = vld [vmem:[#allocation2 + $0x40] sm:$0xff]
      %v787 = vld [vmem:[#allocation2 + $0x48] sm:$0xff]
      %v788 = vld [vmem:[#allocation2 + $0x50] sm:$0xff]
      %v789 = vld [vmem:[#allocation2 + $0x58] sm:$0xff]
      %v790 = vld [vmem:[#allocation2 + $0x60] sm:$0xff]
      %v791 = vld [vmem:[#allocation2 + $0x68] sm:$0xff]
      %v792 = vld [vmem:[#allocation2 + $0x70] sm:$0xff]
      %v793 = vld [vmem:[#allocation2 + $0x78] sm:$0xff]
      %v794 = vld [vmem:[#allocation3] sm:$0xff]
      %v795 = vld [vmem:[#allocation3 + $0x8] sm:$0xff]
      %v796 = vld [vmem:[#allocation3 + $0x10] sm:$0xff]
      %v797 = vld [vmem:[#allocation3 + $0x18] sm:$0xff]
      %v798 = vld [vmem:[#allocation3 + $0x20] sm:$0xff]
      %v799 = vld [vmem:[#allocation3 + $0x28] sm:$0xff]
      %v800 = vld [vmem:[#allocation3 + $0x30] sm:$0xff]
      %v801 = vld [vmem:[#allocation3 + $0x38] sm:$0xff]
      %v802 = vld [vmem:[#allocation3 + $0x40] sm:$0xff]
      %v803 = vld [vmem:[#allocation3 + $0x48] sm:$0xff]
      %v804 = vld [vmem:[#allocation3 + $0x50] sm:$0xff]
      %v805 = vld [vmem:[#allocation3 + $0x58] sm:$0xff]
      %v806 = vld [vmem:[#allocation3 + $0x60] sm:$0xff]
      %v807 = vld [vmem:[#allocation3 + $0x68] sm:$0xff]
      %v808 = vld [vmem:[#allocation3 + $0x70] sm:$0xff]
      %v809 = vld [vmem:[#allocation3 + $0x78] sm:$0xff]
      %v810 = vlog2.pop %v794
      %v811 = vmul.f32 %v810, 0.6931472
      %v812 = vlog2.pop %v795
      %v813 = vmul.f32 %v812, 0.6931472
      %v814 = vlog2.pop %v796
      %v815 = vmul.f32 %v814, 0.6931472
      %v816 = vlog2.pop %v797
      %v817 = vmul.f32 %v816, 0.6931472
      %v818 = vlog2.pop %v798
      %v819 = vmul.f32 %v818, 0.6931472
      %v820 = vlog2.pop %v799
      %v821 = vmul.f32 %v820, 0.6931472
      %v822 = vlog2.pop %v800
      %v823 = vmul.f32 %v822, 0.6931472
      %v824 = vlog2.pop %v801
      %v825 = vmul.f32 %v824, 0.6931472
      %v826 = vlog2.pop %v802
      %v827 = vmul.f32 %v826, 0.6931472
      %v828 = vlog2.pop %v803
      %v829 = vmul.f32 %v828, 0.6931472
      %v830 = vlog2.pop %v804
      %v831 = vmul.f32 %v830, 0.6931472
      %v832 = vlog2.pop %v805
      %v833 = vmul.f32 %v832, 0.6931472
      %v834 = vlog2.pop %v806
      %v835 = vmul.f32 %v834, 0.6931472
      %v836 = vlog2.pop %v807
      %v837 = vmul.f32 %v836, 0.6931472
      %v838 = vlog2.pop %v808
      %v839 = vmul.f32 %v838, 0.6931472
      %v840 = vlog2.pop %v809
      %v841 = vmul.f32 %v840, 0.6931472
      %v842 = vadd.f32 %v778, %v811
      %v843 = vadd.f32 %v779, %v813
      %v844 = vadd.f32 %v780, %v815
      %v845 = vadd.f32 %v781, %v817
      %v846 = vadd.f32 %v782, %v819
      %v847 = vadd.f32 %v783, %v821
      %v848 = vadd.f32 %v784, %v823
      %v849 = vadd.f32 %v785, %v825
      %v850 = vadd.f32 %v786, %v827
      %v851 = vadd.f32 %v787, %v829
      %v852 = vadd.f32 %v788, %v831
      %v853 = vadd.f32 %v789, %v833
      %v854 = vadd.f32 %v790, %v835
      %v855 = vadd.f32 %v791, %v837
      %v856 = vadd.f32 %v792, %v839
      %v857 = vadd.f32 %v793, %v841
      %v858 = vld [vmem:[#allocation4] sm:$0xff]
      %v859 = vld [vmem:[#allocation4 + $0x8] sm:$0xff]
      %v860 = vld [vmem:[#allocation4 + $0x10] sm:$0xff]
      %v861 = vld [vmem:[#allocation4 + $0x18] sm:$0xff]
      %v862 = vld [vmem:[#allocation4 + $0x20] sm:$0xff]
      %v863 = vld [vmem:[#allocation4 + $0x28] sm:$0xff]
      %v864 = vld [vmem:[#allocation4 + $0x30] sm:$0xff]
      %v865 = vld [vmem:[#allocation4 + $0x38] sm:$0xff]
      %v866 = vld [vmem:[#allocation4 + $0x40] sm:$0xff]
      %v867 = vld [vmem:[#allocation4 + $0x48] sm:$0xff]
      %v868 = vld [vmem:[#allocation4 + $0x50] sm:$0xff]
      %v869 = vld [vmem:[#allocation4 + $0x58] sm:$0xff]
      %v870 = vld [vmem:[#allocation4 + $0x60] sm:$0xff]
      %v871 = vld [vmem:[#allocation4 + $0x68] sm:$0xff]
      %v872 = vld [vmem:[#allocation4 + $0x70] sm:$0xff]
      %v873 = vld [vmem:[#allocation4 + $0x78] sm:$0xff]
      %v874 = vsub.f32 %v842, %v858
      %v875 = vsub.f32 %v843, %v859
      %v876 = vsub.f32 %v844, %v860
      %v877 = vsub.f32 %v845, %v861
      %v878 = vsub.f32 %v846, %v862
      %v879 = vsub.f32 %v847, %v863
      %v880 = vsub.f32 %v848, %v864
      %v881 = vsub.f32 %v849, %v865
      %v882 = vsub.f32 %v850, %v866
      %v883 = vsub.f32 %v851, %v867
      %v884 = vsub.f32 %v852, %v868
      %v885 = vsub.f32 %v853, %v869
      %v886 = vsub.f32 %v854, %v870
      %v887 = vsub.f32 %v855, %v871
      %v888 = vsub.f32 %v856, %v872
      %v889 = vsub.f32 %v857, %v873
      %890 = vxpose.xlu0.b32.start [1/16] %v874, 128
      %891 = vxpose.xlu0.b32.cont [2/16] %v875, 128
      %892 = vxpose.xlu0.b32.cont [3/16] %v876, 128
      %893 = vxpose.xlu0.b32.cont [4/16] %v877, 128
      %894 = vxpose.xlu0.b32.cont [5/16] %v878, 128
      %895 = vxpose.xlu0.b32.cont [6/16] %v879, 128
      %896 = vxpose.xlu0.b32.cont [7/16] %v880, 128
      %897 = vxpose.xlu0.b32.cont [8/16] %v881, 128
      %898 = vxpose.xlu0.b32.cont [9/16] %v882, 128
      %899 = vxpose.xlu0.b32.cont [10/16] %v883, 128
      %900 = vxpose.xlu0.b32.cont [11/16] %v884, 128
      %901 = vxpose.xlu0.b32.cont [12/16] %v885, 128
      %902 = vxpose.xlu0.b32.cont [13/16] %v886, 128
      %903 = vxpose.xlu0.b32.cont [14/16] %v887, 128
      %904 = vxpose.xlu0.b32.cont [15/16] %v888, 128
      %905 = vxpose.xlu0.b32.end [16/16] %v889, 128
      %v906 = vpop.trf.xlu0
      %v907 = vpop.trf.xlu0
      %v908 = vpop.trf.xlu0
      %v909 = vpop.trf.xlu0
      %v910 = vpop.trf.xlu0
      %v911 = vpop.trf.xlu0
      %v912 = vpop.trf.xlu0
      %v913 = vpop.trf.xlu0
      %v914 = vpop.trf.xlu0
      %v915 = vpop.trf.xlu0
      %v916 = vpop.trf.xlu0
      %v917 = vpop.trf.xlu0
      %v918 = vpop.trf.xlu0
      %v919 = vpop.trf.xlu0
      %v920 = vpop.trf.xlu0
      %v921 = vpop.trf.xlu0
      %s922 = smul.u32 0, 128
      %v923 = vstv %s922
      %v924 = vadd.s32 %v923, %v98
      %vm925 = vcmp.lt.s32.totalorder %v924, 8
      %v926 = vsel %vm925, %v906, 0.0
      %927 = vst [vmem:[#allocation5] sm:$0x1] %v926
    $region17: #{tpu_custom_call.1} parent=1 // pred_fallthru
      _
    // Predicated region
    $region18: #{tpu_custom_call.1} parent=1 // pred_check
      _
    $region19: #{tpu_custom_call.1} parent=1 // pred_check_branch
      %929 = sbr.rel (0) target = $region21
    $region20: #{tpu_custom_call.1} parent=1 // pred_region
      %931 = vsyncadd [#allocation6], 0
      %s933 = sshll.u32 [#allocation5], 4
      %s934 = int_to_ptr.vmem [resolvable:$true] %s933
      %s935 = sshll.u32 %s2, 4
      %s936 = int_to_ptr.hbm [resolvable:$true] %s935
      %938 = dma.vmem_to_hbm [thread:$0]  %s934, 16, %s936, [#allocation6]
    $region21: #{tpu_custom_call.1} parent=1 // pred_fallthru
      _
    // Predicated region
    $region22: #{tpu_custom_call.1} parent=1 // pred_check
      _
    $region23: #{tpu_custom_call.1} parent=1 // pred_check_branch
      %940 = sbr.rel (0) target = $region25
    $region24: #{tpu_custom_call.1} parent=1 // pred_region
      %942 = dma.done [#allocation6], 16
    $region25: #{tpu_custom_call.1} parent=1 // pred_fallthru
      _
    %943 = vsyncpa [#allocation6], 1

</llo_original>
